<compile_context>
chip_gen: v7x
topology: tpu7x:2x2x1
jax: 0.10.0
libtpu: 0.0.40
codegen_flags: <defaults>
</compile_context>

<pallas_src>
import jax
import jax.numpy as jnp
import numpy as np
from jax import lax
from jax.experimental import pallas as pl
from jax.experimental.pallas import tpu as pltpu


def _diffnet_kernel(scal_ref,            # SMEM (2,): [factor, bv2]
                    s_ref,               # VMEM (TB, n): S batch tile, natural layout
                    wf1t_ref, bf1_ref,   # (hF, n), (hF, 1)   F first layer (transposed)
                    wct_ref,  bc_ref,    # (hV, hF), (hV, 1)  folded wf2->wv1 layer
                    wv1t_ref, bv1_ref,   # (hV, n), (hV, 1)   V first layer (transposed)
                    wv2_ref,             # (hV, 1)            V output weights
                    out_ref):            # VMEM (1, TB): lane-dense output row
    s = s_ref[...]                                           # (TB, n) f32
    contract_n = (((1,), (1,)), ((), ()))                    # contract on n of both operands

    # F hidden layer, lane-dense: (hF, TB)
    h_f = jnp.maximum(
        lax.dot_general(wf1t_ref[...], s, dimension_numbers=contract_n,
                        preferred_element_type=jnp.float32) + bf1_ref[...],
        0.0)

    # V hidden layer on F(S) via folded weights (no f_s materialization): (hV, TB)
    g1 = jnp.maximum(
        jnp.dot(wct_ref[...], h_f, preferred_element_type=jnp.float32) + bc_ref[...],
        0.0)

    # V hidden layer on S directly: (hV, TB)
    g2 = jnp.maximum(
        lax.dot_general(wv1t_ref[...], s, dimension_numbers=contract_n,
                        preferred_element_type=jnp.float32) + bv1_ref[...],
        0.0)

    # Width-1 output layer as VPU multiply + sublane (XLU) reduce; +bv2 bias.
    w_out = wv2_ref[...]                                     # (hV, 1)
    v1 = jnp.sum(g1 * w_out, axis=0, keepdims=True) + scal_ref[1]   # (1, TB)
    v2 = jnp.sum(g2 * w_out, axis=0, keepdims=True) + scal_ref[1]   # (1, TB)

    # out = V(F(S))[0] + factor * V(S)[0]   (factor @ row == scalar multiply)
    out_ref[...] = v1 + scal_ref[0] * v2


def _pick_tile_b(B):
    """Largest 128-multiple divisor of B (cap 2048, keep >=2 grid steps when big)."""
    if B % 128 != 0:
        return B                       # small / unaligned batch: single full tile
    cap = min(2048, B // 2) if B >= 256 else B
    tile_b = 128
    t = 256
    while t <= cap:
        if B % t == 0:
            tile_b = t
        t += 128
    return tile_b


def diffnet_forward(S, Sdot, params):
    """Pallas forward of _DiffNet; returns the torch-facing (1, B) row."""
    del Sdot  # V(...)[0] never reads Sdot -> do not DMA it into VMEM.
    B, n = S.shape
    hf = params["wf1"].shape[1]
    hv = params["wv1"].shape[1]
    f32 = jnp.float32

    # Offline (trace-time) parameter plumbing — tiny, done once:
    #   fold F's linear output layer into V's first layer (no nonlinearity between).
    wf1_t = params["wf1"].T                                            # (hf, n)
    bf1_c = params["bf1"].reshape(hf, 1)                               # (hf, 1)
    wc_t = (params["wf2"] @ params["wv1"]).T                           # (hv, hf)
    bc_c = (params["bf2"] @ params["wv1"] + params["bv1"]).reshape(hv, 1)  # (hv, 1)
    wv1_t = params["wv1"].T                                            # (hv, n)
    bv1_c = params["bv1"].reshape(hv, 1)                               # (hv, 1)
    wv2_c = params["wv2"].reshape(hv, 1)                               # (hv, 1)
    scal = jnp.concatenate([params["factor"].reshape(1),
                            params["bv2"].reshape(1)]).astype(f32)     # flat (2,) scalars

    tile_b = _pick_tile_b(B)
    grid = (B // tile_b,)

    vmem_full = pl.BlockSpec(memory_space=pltpu.MemorySpace.VMEM)   # whole array, resident
    smem_full = pl.BlockSpec(memory_space=pltpu.MemorySpace.SMEM)

    out = pl.pallas_call(
        _diffnet_kernel,
        out_shape=jax.ShapeDtypeStruct((1, B), f32),
        grid=grid,
        in_specs=[
            smem_full,                                        # [factor, bv2] scalars
            pl.BlockSpec((tile_b, n), lambda i: (i, 0)),      # S batch tile, natural layout
            vmem_full, vmem_full,                             # wf1^T, bf1
            vmem_full, vmem_full,                             # folded Wc^T, bc
            vmem_full, vmem_full,                             # wv1^T, bv1
            vmem_full,                                        # wv2
        ],
        out_specs=pl.BlockSpec((1, tile_b), lambda i: (0, i)),  # lane-dense output row
        compiler_params=pltpu.CompilerParams(
            dimension_semantics=("parallel",),
            vmem_limit_bytes=32 * 1024 * 1024,
        ),
    )(scal, S.astype(f32), wf1_t, bf1_c, wc_t, bc_c, wv1_t, bv1_c, wv2_c)

    return out   # already (1, B); no wrapper reshape needed


def make_params(n, hf, hv):
    """Deterministic synthetic parameters (synthetic kernel, not a checkpoint)."""
    keys = jax.random.split(jax.random.PRNGKey(1), 8)
    return {
        # EstimNet F: n -> hf -> n   (weights stored (in, out): x @ W + b)
        "wf1": 0.1 * jax.random.normal(keys[0], (n, hf), jnp.float32),
        "bf1": 0.1 * jax.random.normal(keys[1], (1, hf), jnp.float32),
        "wf2": 0.1 * jax.random.normal(keys[2], (hf, n), jnp.float32),
        "bf2": 0.1 * jax.random.normal(keys[3], (1, n), jnp.float32),
        # Lyapunov net V: n -> hv -> 1
        "wv1": 0.1 * jax.random.normal(keys[4], (n, hv), jnp.float32),
        "bv1": 0.1 * jax.random.normal(keys[5], (1, hv), jnp.float32),
        "wv2": 0.1 * jax.random.normal(keys[6], (hv, 1), jnp.float32),
        "bv2": 0.1 * jax.random.normal(keys[7], (1, 1), jnp.float32),
        # self.factor = nn.Parameter(-1 * torch.ones([1, 1]))
        "factor": -1.0 * jnp.ones((1, 1), jnp.float32),
    }


def diffnet_reference(S, Sdot, p):
    """Pure-JAX reference of the same torch semantics, for validation."""
    def F(x):
        return jnp.maximum(x @ p["wf1"] + p["bf1"], 0.0) @ p["wf2"] + p["bf2"]

    def Vrow(x):  # V(...)[0]: row vector (1, B) of Lyapunov values
        return (jnp.maximum(x @ p["wv1"] + p["bv1"], 0.0) @ p["wv2"] + p["bv2"]).reshape(1, -1)

    return Vrow(F(S)) + p["factor"] @ Vrow(S)


if __name__ == "__main__":
    B, n, hf, hv = 2, 4, 16, 32   # small shapes: batch=2, state dim=4, hidden 16/32

    params = make_params(n, hf, hv)
    kS, kSd = jax.random.split(jax.random.PRNGKey(0))
    S = jax.random.normal(kS, (B, n), jnp.float32)
    Sdot = jax.random.normal(kSd, (B, n), jnp.float32)

    out = diffnet_forward(S, Sdot, params)
    out = jax.block_until_ready(out)

    ref = diffnet_reference(S, Sdot, params)
    np.testing.assert_allclose(np.asarray(out), np.asarray(ref), rtol=1e-5, atol=1e-5)

    print("KERNEL_OK")
</pallas_src>

<mosaic_0001>
module attributes {stable_mosaic.version = 11 : i64} {
  func.func @_diffnet_kernel(%arg0: i32, %arg1: memref<2xf32, #tpu.memory_space<smem>>, %arg2: memref<2x4xf32, #tpu.memory_space<vmem>>, %arg3: memref<16x4xf32, #tpu.memory_space<vmem>>, %arg4: memref<16x1xf32, #tpu.memory_space<vmem>>, %arg5: memref<32x16xf32, #tpu.memory_space<vmem>>, %arg6: memref<32x1xf32, #tpu.memory_space<vmem>>, %arg7: memref<32x4xf32, #tpu.memory_space<vmem>>, %arg8: memref<32x1xf32, #tpu.memory_space<vmem>>, %arg9: memref<32x1xf32, #tpu.memory_space<vmem>>, %arg10: memref<1x2xf32, #tpu.memory_space<vmem>>) attributes {dimension_semantics = [#tpu.dimension_semantics<parallel>], iteration_bounds = array<i64: 1>, scalar_prefetch = 0 : i64, scratch_operands = 0 : i64, tpu.core_type = #tpu.core_type<tc>, window_params = [{transform_indices = @transform_0, window_bounds = array<i64: 2>}, {transform_indices = @transform_1, window_bounds = array<i64: 2, 4>}, {pipeline_mode = #tpu.pipeline_mode<synchronous>, transform_indices = @transform_2, window_bounds = array<i64: 16, 4>}, {pipeline_mode = #tpu.pipeline_mode<synchronous>, transform_indices = @transform_3, window_bounds = array<i64: 16, 1>}, {pipeline_mode = #tpu.pipeline_mode<synchronous>, transform_indices = @transform_4, window_bounds = array<i64: 32, 16>}, {pipeline_mode = #tpu.pipeline_mode<synchronous>, transform_indices = @transform_5, window_bounds = array<i64: 32, 1>}, {pipeline_mode = #tpu.pipeline_mode<synchronous>, transform_indices = @transform_6, window_bounds = array<i64: 32, 4>}, {pipeline_mode = #tpu.pipeline_mode<synchronous>, transform_indices = @transform_7, window_bounds = array<i64: 32, 1>}, {pipeline_mode = #tpu.pipeline_mode<synchronous>, transform_indices = @transform_8, window_bounds = array<i64: 32, 1>}, {transform_indices = @transform_9, window_bounds = array<i64: 1, 2>}]} {
    %c0 = arith.constant 0 : index
    %c0_0 = arith.constant 0 : index
    %0 = vector.load %arg2[%c0, %c0_0] : memref<2x4xf32, #tpu.memory_space<vmem>>, vector<2x4xf32>
    %c0_1 = arith.constant 0 : index
    %c0_2 = arith.constant 0 : index
    %1 = vector.load %arg3[%c0_1, %c0_2] : memref<16x4xf32, #tpu.memory_space<vmem>>, vector<16x4xf32>
    %cst = arith.constant dense<0.000000e+00> : vector<16x2xf32>
    %2 = tpu.matmul %1, %0, %cst {dimension_numbers = #tpu.dot_dimension_numbers<[1], [1], [0], [0], [0, 0, 1, 0], [], []>} : vector<16x4xf32>, vector<2x4xf32>, vector<16x2xf32> -> vector<16x2xf32>
    %c0_3 = arith.constant 0 : index
    %c0_4 = arith.constant 0 : index
    %3 = vector.load %arg4[%c0_3, %c0_4] : memref<16x1xf32, #tpu.memory_space<vmem>>, vector<16x1xf32>
    %4 = vector.broadcast %3 : vector<16x1xf32> to vector<16x2xf32>
    %5 = arith.addf %2, %4 : vector<16x2xf32>
    %cst_5 = arith.constant 0.000000e+00 : f32
    %6 = vector.broadcast %cst_5 : f32 to vector<16x2xf32>
    %7 = arith.maximumf %5, %6 : vector<16x2xf32>
    %c0_6 = arith.constant 0 : index
    %c0_7 = arith.constant 0 : index
    %8 = vector.load %arg5[%c0_6, %c0_7] : memref<32x16xf32, #tpu.memory_space<vmem>>, vector<32x16xf32>
    %cst_8 = arith.constant dense<0.000000e+00> : vector<32x2xf32>
    %9 = tpu.matmul %8, %7, %cst_8 {dimension_numbers = #tpu.dot_dimension_numbers<[1], [0], [0], [1], [0, 0, 1, 1], [], []>} : vector<32x16xf32>, vector<16x2xf32>, vector<32x2xf32> -> vector<32x2xf32>
    %c0_9 = arith.constant 0 : index
    %c0_10 = arith.constant 0 : index
    %10 = vector.load %arg6[%c0_9, %c0_10] : memref<32x1xf32, #tpu.memory_space<vmem>>, vector<32x1xf32>
    %11 = vector.broadcast %10 : vector<32x1xf32> to vector<32x2xf32>
    %12 = arith.addf %9, %11 : vector<32x2xf32>
    %cst_11 = arith.constant 0.000000e+00 : f32
    %13 = vector.broadcast %cst_11 : f32 to vector<32x2xf32>
    %14 = arith.maximumf %12, %13 : vector<32x2xf32>
    %c0_12 = arith.constant 0 : index
    %c0_13 = arith.constant 0 : index
    %15 = vector.load %arg7[%c0_12, %c0_13] : memref<32x4xf32, #tpu.memory_space<vmem>>, vector<32x4xf32>
    %cst_14 = arith.constant dense<0.000000e+00> : vector<32x2xf32>
    %16 = tpu.matmul %15, %0, %cst_14 {dimension_numbers = #tpu.dot_dimension_numbers<[1], [1], [0], [0], [0, 0, 1, 0], [], []>} : vector<32x4xf32>, vector<2x4xf32>, vector<32x2xf32> -> vector<32x2xf32>
    %c0_15 = arith.constant 0 : index
    %c0_16 = arith.constant 0 : index
    %17 = vector.load %arg8[%c0_15, %c0_16] : memref<32x1xf32, #tpu.memory_space<vmem>>, vector<32x1xf32>
    %18 = vector.broadcast %17 : vector<32x1xf32> to vector<32x2xf32>
    %19 = arith.addf %16, %18 : vector<32x2xf32>
    %cst_17 = arith.constant 0.000000e+00 : f32
    %20 = vector.broadcast %cst_17 : f32 to vector<32x2xf32>
    %21 = arith.maximumf %19, %20 : vector<32x2xf32>
    %c0_18 = arith.constant 0 : index
    %c0_19 = arith.constant 0 : index
    %22 = vector.load %arg9[%c0_18, %c0_19] : memref<32x1xf32, #tpu.memory_space<vmem>>, vector<32x1xf32>
    %23 = vector.broadcast %22 : vector<32x1xf32> to vector<32x2xf32>
    %24 = arith.mulf %14, %23 : vector<32x2xf32>
    %cst_20 = arith.constant dense<0.000000e+00> : vector<2xf32>
    %25 = vector.multi_reduction <add>, %24, %cst_20 [0] : vector<32x2xf32> to vector<2xf32>
    %26 = vector.shape_cast %25 : vector<2xf32> to vector<1x2xf32>
    %c1 = arith.constant 1 : index
    %27 = memref.load %arg1[%c1] : memref<2xf32, #tpu.memory_space<smem>>
    %28 = vector.broadcast %27 : f32 to vector<1x2xf32>
    %29 = arith.addf %26, %28 : vector<1x2xf32>
    %30 = vector.broadcast %22 : vector<32x1xf32> to vector<32x2xf32>
    %31 = arith.mulf %21, %30 : vector<32x2xf32>
    %cst_21 = arith.constant dense<0.000000e+00> : vector<2xf32>
    %32 = vector.multi_reduction <add>, %31, %cst_21 [0] : vector<32x2xf32> to vector<2xf32>
    %33 = vector.shape_cast %32 : vector<2xf32> to vector<1x2xf32>
    %c1_22 = arith.constant 1 : index
    %34 = memref.load %arg1[%c1_22] : memref<2xf32, #tpu.memory_space<smem>>
    %35 = vector.broadcast %34 : f32 to vector<1x2xf32>
    %36 = arith.addf %33, %35 : vector<1x2xf32>
    %c0_23 = arith.constant 0 : index
    %37 = memref.load %arg1[%c0_23] : memref<2xf32, #tpu.memory_space<smem>>
    %38 = vector.broadcast %37 : f32 to vector<1x2xf32>
    %39 = arith.mulf %38, %36 : vector<1x2xf32>
    %40 = arith.addf %29, %39 : vector<1x2xf32>
    %c0_24 = arith.constant 0 : index
    %c0_25 = arith.constant 0 : index
    %41 = vector.load %arg10[%c0_24, %c0_25] : memref<1x2xf32, #tpu.memory_space<vmem>>, vector<1x2xf32>
    tpu.vector_store %arg10[%c0_24, %c0_25], %40 {strides = array<i32>} : memref<1x2xf32, #tpu.memory_space<vmem>>, vector<1x2xf32>,
    return
  }
  func.func @transform_0(%arg0: i32) -> i32 {
    %c0_i32 = arith.constant 0 : i32
    %c0_i32_0 = arith.constant 0 : i32
    return %c0_i32 : i32
  }
  func.func @transform_1(%arg0: i32) -> (i32, i32) {
    %c0_i32 = arith.constant 0 : i32
    %c0_i32_0 = arith.constant 0 : i32
    return %arg0, %c0_i32 : i32, i32
  }
  func.func @transform_2(%arg0: i32) -> (i32, i32) {
    %c0_i32 = arith.constant 0 : i32
    %c0_i32_0 = arith.constant 0 : i32
    %c0_i32_1 = arith.constant 0 : i32
    return %c0_i32, %c0_i32_0 : i32, i32
  }
  func.func @transform_3(%arg0: i32) -> (i32, i32) {
    %c0_i32 = arith.constant 0 : i32
    %c0_i32_0 = arith.constant 0 : i32
    %c0_i32_1 = arith.constant 0 : i32
    return %c0_i32, %c0_i32_0 : i32, i32
  }
  func.func @transform_4(%arg0: i32) -> (i32, i32) {
    %c0_i32 = arith.constant 0 : i32
    %c0_i32_0 = arith.constant 0 : i32
    %c0_i32_1 = arith.constant 0 : i32
    return %c0_i32, %c0_i32_0 : i32, i32
  }
  func.func @transform_5(%arg0: i32) -> (i32, i32) {
    %c0_i32 = arith.constant 0 : i32
    %c0_i32_0 = arith.constant 0 : i32
    %c0_i32_1 = arith.constant 0 : i32
    return %c0_i32, %c0_i32_0 : i32, i32
  }
  func.func @transform_6(%arg0: i32) -> (i32, i32) {
    %c0_i32 = arith.constant 0 : i32
    %c0_i32_0 = arith.constant 0 : i32
    %c0_i32_1 = arith.constant 0 : i32
    return %c0_i32, %c0_i32_0 : i32, i32
  }
  func.func @transform_7(%arg0: i32) -> (i32, i32) {
    %c0_i32 = arith.constant 0 : i32
    %c0_i32_0 = arith.constant 0 : i32
    %c0_i32_1 = arith.constant 0 : i32
    return %c0_i32, %c0_i32_0 : i32, i32
  }
  func.func @transform_8(%arg0: i32) -> (i32, i32) {
    %c0_i32 = arith.constant 0 : i32
    %c0_i32_0 = arith.constant 0 : i32
    %c0_i32_1 = arith.constant 0 : i32
    return %c0_i32, %c0_i32_0 : i32, i32
  }
  func.func @transform_9(%arg0: i32) -> (i32, i32) {
    %c0_i32 = arith.constant 0 : i32
    %c0_i32_0 = arith.constant 0 : i32
    return %c0_i32, %arg0 : i32, i32
  }
}

</mosaic_0001>

<llo_original>
// kernel: tpu_custom_call.1
$region0: #{tpu_custom_call.1}
  #allocation0 [shape = 'u32[]', space=smem, size = 0x4, offset = 0x4, fixed_abs, tag = 'smem constant byte address 0x4 - core index']
  #allocation1 [shape = 'u32[144,128]{1,0:T(1,128)}', space=vmem, size = 0x12000, scoped, tag = 'internal scratch']
  %s0 = inlined_call_operand.vmem [shape: f32[2], index: 0, kind: input, shape index: {}]
  %s1 = inlined_call_operand.vmem [shape: f32[2,4], index: 1, kind: input, shape index: {}]
  %s2 = inlined_call_operand.vmem [shape: f32[16,4], index: 2, kind: input, shape index: {}]
  %s3 = inlined_call_operand.vmem [shape: f32[16,1], index: 3, kind: input, shape index: {}]
  %s4 = inlined_call_operand.vmem [shape: f32[32,16], index: 4, kind: input, shape index: {}]
  %s5 = inlined_call_operand.vmem [shape: f32[32,1], index: 5, kind: input, shape index: {}]
  %s6 = inlined_call_operand.vmem [shape: f32[32,4], index: 6, kind: input, shape index: {}]
  %s7 = inlined_call_operand.vmem [shape: f32[32,1], index: 7, kind: input, shape index: {}]
  %s8 = inlined_call_operand.vmem [shape: f32[32,1], index: 8, kind: input, shape index: {}]
  %s9 = inlined_call_operand.hbm [shape: f32[1,2], index: 9, kind: output, shape index: {}]
  %s10 = sld [smem:[#allocation0]]
  $region50: #{tpu_custom_call.1} parent=0
    _
  %s12 = ssub.s32 1, %s10
  %s13 = scalar_select 0, %s12, %s10
  $region1: #{tpu_custom_call.1} parent=0
    #allocation2 [shape = 'u8[512]{0}', space=smem, size = 0x200, scoped, tag = 'input window, operand 0, single buffered']
    #allocation3 [shape = 's32[1]{0}', space=sflag, size = 0x4, scoped, tag = 'scoped memory for tpu_custom_call.1']
    #allocation4 [shape = 's32[1]{0}', space=sflag, size = 0x4, scoped, tag = 'scoped memory for tpu_custom_call.1']
    #allocation5 [shape = 'u8[512]{0}', space=vmem, size = 0x400, scoped, tag = 'output window, operand 0, single buffered']
    %14 = vsyncpa [#allocation4], 0
    %15 = vsyncpa [#allocation3], 0
    // Predicated region
    $region2: #{tpu_custom_call.1} parent=1 // pred_check
      _
    $region3: #{tpu_custom_call.1} parent=1 // pred_check_branch
      %17 = sbr.rel (0) target = $region5
    $region4: #{tpu_custom_call.1} parent=1 // pred_region
      %s19 = ssub.s32 16, 16
      %20 = vsyncadd [#allocation4], %s19
      %s22 = sshll.u32 %s0, 4
      %s23 = int_to_ptr.vmem [resolvable:$true] %s22
      %25 = dma.vmem_to_smem %s23, 16, [#allocation2], [#allocation4]
    $region5: #{tpu_custom_call.1} parent=1 // pred_fallthru
      _
    // Predicated region
    $region6: #{tpu_custom_call.1} parent=1 // pred_check
      _
    $region7: #{tpu_custom_call.1} parent=1 // pred_check_branch
      %27 = sbr.rel (0) target = $region9
    $region8: #{tpu_custom_call.1} parent=1 // pred_region
      _
    $region9: #{tpu_custom_call.1} parent=1 // pred_fallthru
      _
    // Predicated region
    $region10: #{tpu_custom_call.1} parent=1 // pred_check
      _
    $region11: #{tpu_custom_call.1} parent=1 // pred_check_branch
      %29 = sbr.rel (0) target = $region13
    $region12: #{tpu_custom_call.1} parent=1 // pred_region
      _
    $region13: #{tpu_custom_call.1} parent=1 // pred_fallthru
      _
    // Predicated region
    $region14: #{tpu_custom_call.1} parent=1 // pred_check
      _
    $region15: #{tpu_custom_call.1} parent=1 // pred_check_branch
      %31 = sbr.rel (0) target = $region17
    $region16: #{tpu_custom_call.1} parent=1 // pred_region
      _
    $region17: #{tpu_custom_call.1} parent=1 // pred_fallthru
      _
    // Predicated region
    $region18: #{tpu_custom_call.1} parent=1 // pred_check
      _
    $region19: #{tpu_custom_call.1} parent=1 // pred_check_branch
      %33 = sbr.rel (0) target = $region21
    $region20: #{tpu_custom_call.1} parent=1 // pred_region
      _
    $region21: #{tpu_custom_call.1} parent=1 // pred_fallthru
      _
    // Predicated region
    $region22: #{tpu_custom_call.1} parent=1 // pred_check
      _
    $region23: #{tpu_custom_call.1} parent=1 // pred_check_branch
      %35 = sbr.rel (0) target = $region25
    $region24: #{tpu_custom_call.1} parent=1 // pred_region
      _
    $region25: #{tpu_custom_call.1} parent=1 // pred_fallthru
      _
    // Predicated region
    $region26: #{tpu_custom_call.1} parent=1 // pred_check
      _
    $region27: #{tpu_custom_call.1} parent=1 // pred_check_branch
      %37 = sbr.rel (0) target = $region29
    $region28: #{tpu_custom_call.1} parent=1 // pred_region
      _
    $region29: #{tpu_custom_call.1} parent=1 // pred_fallthru
      _
    // Predicated region
    $region30: #{tpu_custom_call.1} parent=1 // pred_check
      _
    $region31: #{tpu_custom_call.1} parent=1 // pred_check_branch
      %39 = sbr.rel (0) target = $region33
    $region32: #{tpu_custom_call.1} parent=1 // pred_region
      _
    $region33: #{tpu_custom_call.1} parent=1 // pred_fallthru
      _
    // Predicated region
    $region34: #{tpu_custom_call.1} parent=1 // pred_check
      _
    $region35: #{tpu_custom_call.1} parent=1 // pred_check_branch
      %41 = sbr.rel (0) target = $region37
    $region36: #{tpu_custom_call.1} parent=1 // pred_region
      _
    $region37: #{tpu_custom_call.1} parent=1 // pred_fallthru
      _
    // Predicated region
    $region38: #{tpu_custom_call.1} parent=1 // pred_check
      _
    $region39: #{tpu_custom_call.1} parent=1 // pred_check_branch
      %43 = sbr.rel (0) target = $region41
    $region40: #{tpu_custom_call.1} parent=1 // pred_region
      %44 = dma.done [#allocation4], 16
    $region41: #{tpu_custom_call.1} parent=1 // pred_fallthru
      _
    %45 = sfence
    %v46 = vld [vmem:[%s1] sm:$0x3]
    %v47 = vld [vmem:[%s2] sm:$0xff]
    %v48 = vld [vmem:[%s2 + $0x8] sm:$0xff]
    %v49 = vld [vmem:[%s3] sm:$0xff]
    %v50 = vld [vmem:[%s3 + $0x8] sm:$0xff]
    %52 = vset.pattern.permute.xlu0 0
    %53 = vperm.xlu0 %52, %v49
    %v54 = vpop.permute.xlu0 %53
    %57 = vset.pattern.permute.xlu0 0
    %58 = vperm.xlu0 %57, %v50
    %v59 = vpop.permute.xlu0 %58
    %vm61 = vcmask 31744
    %v63 = vsel %vm61, %v47, 0
    %v66 = vsel %vm61, %v48, 0
    %v69 = vsel %vm61, %v46, 0
    %71 = vmatprep.subr.mxu0 0.0
    %72 = vmatpush1.xpose.msra.mxu0 %v69
    %73 = vmatprep.subr.mxu0 0.0
    %74 = vmatpush1.xpose.msra.mxu0 0.0
    %75 = vmatprep.subr.mxu0 0.0
    %76 = vmatpush1.xpose.msra.mxu0 0.0
    %77 = vmatprep.subr.mxu0 0.0
    %78 = vmatpush1.xpose.msra.mxu0 0.0
    %79 = vmatprep.subr.mxu0 0.0
    %80 = vmatpush1.xpose.msra.mxu0 0.0
    %81 = vmatprep.subr.mxu0 0.0
    %82 = vmatpush1.xpose.msra.mxu0 0.0
    %83 = vmatprep.subr.mxu0 0.0
    %84 = vmatpush1.xpose.msra.mxu0 0.0
    %85 = vmatprep.subr.mxu0 0.0
    %86 = vmatpush1.xpose.msra.mxu0 0.0
    %87 = vmatprep.subr.mxu0 0.0
    %88 = vmatpush1.xpose.msra.mxu0 0.0
    %89 = vmatprep.subr.mxu0 0.0
    %90 = vmatpush1.xpose.msra.mxu0 0.0
    %91 = vmatprep.subr.mxu0 0.0
    %92 = vmatpush1.xpose.msra.mxu0 0.0
    %93 = vmatprep.subr.mxu0 0.0
    %94 = vmatpush1.xpose.msra.mxu0 0.0
    %95 = vmatprep.subr.mxu0 0.0
    %96 = vmatpush1.xpose.msra.mxu0 0.0
    %97 = vmatprep.subr.mxu0 0.0
    %98 = vmatpush1.xpose.msra.mxu0 0.0
    %99 = vmatprep.subr.mxu0 0.0
    %100 = vmatpush1.xpose.msra.mxu0 0.0
    %101 = vmatprep.subr.mxu0 0.0
    %102 = vmatpush1.xpose.msra.mxu0 0.0
    %103 = vmatprep.subr.mxu0 0.0
    %104 = vmatpush1.xpose.msra.mxu0 0.0
    %105 = vmatprep.subr.mxu0 0.0
    %106 = vmatpush1.xpose.msra.mxu0 0.0
    %107 = vmatprep.subr.mxu0 0.0
    %108 = vmatpush1.xpose.msra.mxu0 0.0
    %109 = vmatprep.subr.mxu0 0.0
    %110 = vmatpush1.xpose.msra.mxu0 0.0
    %111 = vmatprep.subr.mxu0 0.0
    %112 = vmatpush1.xpose.msra.mxu0 0.0
    %113 = vmatprep.subr.mxu0 0.0
    %114 = vmatpush1.xpose.msra.mxu0 0.0
    %115 = vmatprep.subr.mxu0 0.0
    %116 = vmatpush1.xpose.msra.mxu0 0.0
    %117 = vmatprep.subr.mxu0 0.0
    %118 = vmatpush1.xpose.msra.mxu0 0.0
    %119 = vmatprep.subr.mxu0 0.0
    %120 = vmatpush1.xpose.msra.mxu0 0.0
    %121 = vmatprep.subr.mxu0 0.0
    %122 = vmatpush1.xpose.msra.mxu0 0.0
    %123 = vmatprep.subr.mxu0 0.0
    %124 = vmatpush1.xpose.msra.mxu0 0.0
    %125 = vmatprep.subr.mxu0 0.0
    %126 = vmatpush1.xpose.msra.mxu0 0.0
    %127 = vmatprep.subr.mxu0 0.0
    %128 = vmatpush1.xpose.msra.mxu0 0.0
    %129 = vmatprep.subr.mxu0 0.0
    %130 = vmatpush1.xpose.msra.mxu0 0.0
    %131 = vmatprep.subr.mxu0 0.0
    %132 = vmatpush1.xpose.msra.mxu0 0.0
    %133 = vmatprep.subr.mxu0 0.0
    %134 = vmatpush1.xpose.msra.mxu0 0.0
    %135 = vmatprep.mubr.f32.mxu0 0.0
    %136 = vmatmul.mubr.f32.gmra.mrb[0].mxu0 %v63
    %v137 = vpop.f32.mrb[0].mxu0
    %v138 = vadd.f32 %v54, %v137
    %v139 = vpop.f32.mrb[0].mxu0
    %140 = vmatprep.mubr.f32.mxu0 0.0
    %141 = vmatmul.mubr.f32.gmra.mrb[0].mxu0 %v66
    %v142 = vpop.f32.mrb[0].mxu0
    %v143 = vadd.f32 %v59, %v142
    %v144 = vpop.f32.mrb[0].mxu0
    %145 = vdwg.mxu0
    %v146 = vmax.f32 %v138, 0.0
    %v147 = vmax.f32 %v143, 0.0
    %v148 = vld [vmem:[%s4] sm:$0xff]
    %v149 = vld [vmem:[%s4 + $0x8] sm:$0xff]
    %v150 = vld [vmem:[%s4 + $0x10] sm:$0xff]
    %v151 = vld [vmem:[%s4 + $0x18] sm:$0xff]
    %v152 = vld [vmem:[%s5] sm:$0xff]
    %v153 = vld [vmem:[%s5 + $0x8] sm:$0xff]
    %v154 = vld [vmem:[%s5 + $0x10] sm:$0xff]
    %v155 = vld [vmem:[%s5 + $0x18] sm:$0xff]
    %157 = vset.pattern.permute.xlu0 0
    %158 = vperm.xlu0 %157, %v152
    %v159 = vpop.permute.xlu0 %158
    %162 = vset.pattern.permute.xlu0 0
    %163 = vperm.xlu0 %162, %v153
    %v164 = vpop.permute.xlu0 %163
    %167 = vset.pattern.permute.xlu0 0
    %168 = vperm.xlu0 %167, %v154
    %v169 = vpop.permute.xlu0 %168
    %172 = vset.pattern.permute.xlu0 0
    %173 = vperm.xlu0 %172, %v155
    %v174 = vpop.permute.xlu0 %173
    %vm176 = vcmask 130048
    %v178 = vsel %vm176, %v148, 0
    %v181 = vsel %vm176, %v149, 0
    %v184 = vsel %vm176, %v150, 0
    %v187 = vsel %vm176, %v151, 0
    %189 = vmatprep.subr.mxu0 0.0
    %190 = vmatpush1.msra.mxu0 %v146
    %191 = vmatprep.subr.mxu0 0.0
    %192 = vmatpush1.msra.mxu0 %v147
    %193 = vmatprep.subr.mxu0 0.0
    %194 = vmatpush1.msra.mxu0 0.0
    %195 = vmatprep.subr.mxu0 0.0
    %196 = vmatpush1.msra.mxu0 0.0
    %197 = vmatprep.subr.mxu0 0.0
    %198 = vmatpush1.msra.mxu0 0.0
    %199 = vmatprep.subr.mxu0 0.0
    %200 = vmatpush1.msra.mxu0 0.0
    %201 = vmatprep.subr.mxu0 0.0
    %202 = vmatpush1.msra.mxu0 0.0
    %203 = vmatprep.subr.mxu0 0.0
    %204 = vmatpush1.msra.mxu0 0.0
    %205 = vmatprep.subr.mxu0 0.0
    %206 = vmatpush1.msra.mxu0 0.0
    %207 = vmatprep.subr.mxu0 0.0
    %208 = vmatpush1.msra.mxu0 0.0
    %209 = vmatprep.subr.mxu0 0.0
    %210 = vmatpush1.msra.mxu0 0.0
    %211 = vmatprep.subr.mxu0 0.0
    %212 = vmatpush1.msra.mxu0 0.0
    %213 = vmatprep.subr.mxu0 0.0
    %214 = vmatpush1.msra.mxu0 0.0
    %215 = vmatprep.subr.mxu0 0.0
    %216 = vmatpush1.msra.mxu0 0.0
    %217 = vmatprep.subr.mxu0 0.0
    %218 = vmatpush1.msra.mxu0 0.0
    %219 = vmatprep.subr.mxu0 0.0
    %220 = vmatpush1.msra.mxu0 0.0
    %221 = vmatprep.subr.mxu0 0.0
    %222 = vmatpush1.msra.mxu0 0.0
    %223 = vmatprep.subr.mxu0 0.0
    %224 = vmatpush1.msra.mxu0 0.0
    %225 = vmatprep.subr.mxu0 0.0
    %226 = vmatpush1.msra.mxu0 0.0
    %227 = vmatprep.subr.mxu0 0.0
    %228 = vmatpush1.msra.mxu0 0.0
    %229 = vmatprep.subr.mxu0 0.0
    %230 = vmatpush1.msra.mxu0 0.0
    %231 = vmatprep.subr.mxu0 0.0
    %232 = vmatpush1.msra.mxu0 0.0
    %233 = vmatprep.subr.mxu0 0.0
    %234 = vmatpush1.msra.mxu0 0.0
    %235 = vmatprep.subr.mxu0 0.0
    %236 = vmatpush1.msra.mxu0 0.0
    %237 = vmatprep.subr.mxu0 0.0
    %238 = vmatpush1.msra.mxu0 0.0
    %239 = vmatprep.subr.mxu0 0.0
    %240 = vmatpush1.msra.mxu0 0.0
    %241 = vmatprep.subr.mxu0 0.0
    %242 = vmatpush1.msra.mxu0 0.0
    %243 = vmatprep.subr.mxu0 0.0
    %244 = vmatpush1.msra.mxu0 0.0
    %245 = vmatprep.subr.mxu0 0.0
    %246 = vmatpush1.msra.mxu0 0.0
    %247 = vmatprep.subr.mxu0 0.0
    %248 = vmatpush1.msra.mxu0 0.0
    %249 = vmatprep.subr.mxu0 0.0
    %250 = vmatpush1.msra.mxu0 0.0
    %251 = vmatprep.subr.mxu0 0.0
    %252 = vmatpush1.msra.mxu0 0.0
    %253 = vmatprep.mubr.f32.mxu0 0.0
    %254 = vmatmul.mubr.f32.gmra.mrb[0].mxu0 %v178
    %v255 = vpop.f32.mrb[0].mxu0
    %v256 = vadd.f32 %v159, %v255
    %v257 = vpop.f32.mrb[0].mxu0
    %258 = vmatprep.mubr.f32.mxu0 0.0
    %259 = vmatmul.mubr.f32.gmra.mrb[0].mxu0 %v181
    %v260 = vpop.f32.mrb[0].mxu0
    %v261 = vadd.f32 %v164, %v260
    %v262 = vpop.f32.mrb[0].mxu0
    %263 = vmatprep.mubr.f32.mxu0 0.0
    %264 = vmatmul.mubr.f32.gmra.mrb[0].mxu0 %v184
    %v265 = vpop.f32.mrb[0].mxu0
    %v266 = vadd.f32 %v169, %v265
    %v267 = vpop.f32.mrb[0].mxu0
    %268 = vmatprep.mubr.f32.mxu0 0.0
    %269 = vmatmul.mubr.f32.gmra.mrb[0].mxu0 %v187
    %v270 = vpop.f32.mrb[0].mxu0
    %v271 = vadd.f32 %v174, %v270
    %v272 = vpop.f32.mrb[0].mxu0
    %273 = vdwg.mxu0
    %v274 = vmax.f32 %v256, 0.0
    %v275 = vmax.f32 %v261, 0.0
    %v276 = vmax.f32 %v266, 0.0
    %v277 = vmax.f32 %v271, 0.0
    %v278 = vld [vmem:[%s6] sm:$0xff]
    %v279 = vld [vmem:[%s6 + $0x8] sm:$0xff]
    %v280 = vld [vmem:[%s6 + $0x10] sm:$0xff]
    %v281 = vld [vmem:[%s6 + $0x18] sm:$0xff]
    %v282 = vld [vmem:[%s7] sm:$0xff]
    %v283 = vld [vmem:[%s7 + $0x8] sm:$0xff]
    %v284 = vld [vmem:[%s7 + $0x10] sm:$0xff]
    %v285 = vld [vmem:[%s7 + $0x18] sm:$0xff]
    %287 = vset.pattern.permute.xlu0 0
    %288 = vperm.xlu0 %287, %v282
    %v289 = vpop.permute.xlu0 %288
    %292 = vset.pattern.permute.xlu0 0
    %293 = vperm.xlu0 %292, %v283
    %v294 = vpop.permute.xlu0 %293
    %297 = vset.pattern.permute.xlu0 0
    %298 = vperm.xlu0 %297, %v284
    %v299 = vpop.permute.xlu0 %298
    %302 = vset.pattern.permute.xlu0 0
    %303 = vperm.xlu0 %302, %v285
    %v304 = vpop.permute.xlu0 %303
    %v307 = vsel %vm61, %v278, 0
    %v310 = vsel %vm61, %v279, 0
    %v313 = vsel %vm61, %v280, 0
    %v316 = vsel %vm61, %v281, 0
    %318 = vmatprep.subr.mxu0 0.0
    %319 = vmatpush1.xpose.msra.mxu0 %v69
    %320 = vmatprep.subr.mxu0 0.0
    %321 = vmatpush1.xpose.msra.mxu0 0.0
    %322 = vmatprep.subr.mxu0 0.0
    %323 = vmatpush1.xpose.msra.mxu0 0.0
    %324 = vmatprep.subr.mxu0 0.0
    %325 = vmatpush1.xpose.msra.mxu0 0.0
    %326 = vmatprep.subr.mxu0 0.0
    %327 = vmatpush1.xpose.msra.mxu0 0.0
    %328 = vmatprep.subr.mxu0 0.0
    %329 = vmatpush1.xpose.msra.mxu0 0.0
    %330 = vmatprep.subr.mxu0 0.0
    %331 = vmatpush1.xpose.msra.mxu0 0.0
    %332 = vmatprep.subr.mxu0 0.0
    %333 = vmatpush1.xpose.msra.mxu0 0.0
    %334 = vmatprep.subr.mxu0 0.0
    %335 = vmatpush1.xpose.msra.mxu0 0.0
    %336 = vmatprep.subr.mxu0 0.0
    %337 = vmatpush1.xpose.msra.mxu0 0.0
    %338 = vmatprep.subr.mxu0 0.0
    %339 = vmatpush1.xpose.msra.mxu0 0.0
    %340 = vmatprep.subr.mxu0 0.0
    %341 = vmatpush1.xpose.msra.mxu0 0.0
    %342 = vmatprep.subr.mxu0 0.0
    %343 = vmatpush1.xpose.msra.mxu0 0.0
    %344 = vmatprep.subr.mxu0 0.0
    %345 = vmatpush1.xpose.msra.mxu0 0.0
    %346 = vmatprep.subr.mxu0 0.0
    %347 = vmatpush1.xpose.msra.mxu0 0.0
    %348 = vmatprep.subr.mxu0 0.0
    %349 = vmatpush1.xpose.msra.mxu0 0.0
    %350 = vmatprep.subr.mxu0 0.0
    %351 = vmatpush1.xpose.msra.mxu0 0.0
    %352 = vmatprep.subr.mxu0 0.0
    %353 = vmatpush1.xpose.msra.mxu0 0.0
    %354 = vmatprep.subr.mxu0 0.0
    %355 = vmatpush1.xpose.msra.mxu0 0.0
    %356 = vmatprep.subr.mxu0 0.0
    %357 = vmatpush1.xpose.msra.mxu0 0.0
    %358 = vmatprep.subr.mxu0 0.0
    %359 = vmatpush1.xpose.msra.mxu0 0.0
    %360 = vmatprep.subr.mxu0 0.0
    %361 = vmatpush1.xpose.msra.mxu0 0.0
    %362 = vmatprep.subr.mxu0 0.0
    %363 = vmatpush1.xpose.msra.mxu0 0.0
    %364 = vmatprep.subr.mxu0 0.0
    %365 = vmatpush1.xpose.msra.mxu0 0.0
    %366 = vmatprep.subr.mxu0 0.0
    %367 = vmatpush1.xpose.msra.mxu0 0.0
    %368 = vmatprep.subr.mxu0 0.0
    %369 = vmatpush1.xpose.msra.mxu0 0.0
    %370 = vmatprep.subr.mxu0 0.0
    %371 = vmatpush1.xpose.msra.mxu0 0.0
    %372 = vmatprep.subr.mxu0 0.0
    %373 = vmatpush1.xpose.msra.mxu0 0.0
    %374 = vmatprep.subr.mxu0 0.0
    %375 = vmatpush1.xpose.msra.mxu0 0.0
    %376 = vmatprep.subr.mxu0 0.0
    %377 = vmatpush1.xpose.msra.mxu0 0.0
    %378 = vmatprep.subr.mxu0 0.0
    %379 = vmatpush1.xpose.msra.mxu0 0.0
    %380 = vmatprep.subr.mxu0 0.0
    %381 = vmatpush1.xpose.msra.mxu0 0.0
    %382 = vmatprep.mubr.f32.mxu0 0.0
    %383 = vmatmul.mubr.f32.gmra.mrb[0].mxu0 %v307
    %v384 = vpop.f32.mrb[0].mxu0
    %v385 = vadd.f32 %v289, %v384
    %v386 = vpop.f32.mrb[0].mxu0
    %387 = vmatprep.mubr.f32.mxu0 0.0
    %388 = vmatmul.mubr.f32.gmra.mrb[0].mxu0 %v310
    %v389 = vpop.f32.mrb[0].mxu0
    %v390 = vadd.f32 %v294, %v389
    %v391 = vpop.f32.mrb[0].mxu0
    %392 = vmatprep.mubr.f32.mxu0 0.0
    %393 = vmatmul.mubr.f32.gmra.mrb[0].mxu0 %v313
    %v394 = vpop.f32.mrb[0].mxu0
    %v395 = vadd.f32 %v299, %v394
    %v396 = vpop.f32.mrb[0].mxu0
    %397 = vmatprep.mubr.f32.mxu0 0.0
    %398 = vmatmul.mubr.f32.gmra.mrb[0].mxu0 %v316
    %v399 = vpop.f32.mrb[0].mxu0
    %v400 = vadd.f32 %v304, %v399
    %v401 = vpop.f32.mrb[0].mxu0
    %402 = vdwg.mxu0
    %v403 = vmax.f32 %v385, 0.0
    %v404 = vmax.f32 %v390, 0.0
    %v405 = vmax.f32 %v395, 0.0
    %v406 = vmax.f32 %v400, 0.0
    %v407 = vld [vmem:[%s8] sm:$0xff]
    %v408 = vld [vmem:[%s8 + $0x8] sm:$0xff]
    %v409 = vld [vmem:[%s8 + $0x10] sm:$0xff]
    %v410 = vld [vmem:[%s8 + $0x18] sm:$0xff]
    %412 = vset.pattern.permute.xlu0 0
    %413 = vperm.xlu0 %412, %v407
    %v414 = vpop.permute.xlu0 %413
    %417 = vset.pattern.permute.xlu0 0
    %418 = vperm.xlu0 %417, %v408
    %v419 = vpop.permute.xlu0 %418
    %422 = vset.pattern.permute.xlu0 0
    %423 = vperm.xlu0 %422, %v409
    %v424 = vpop.permute.xlu0 %423
    %427 = vset.pattern.permute.xlu0 0
    %428 = vperm.xlu0 %427, %v410
    %v429 = vpop.permute.xlu0 %428
    %v431 = vmul.f32 %v274, %v414
    %v432 = vmul.f32 %v275, %v419
    %v433 = vmul.f32 %v276, %v424
    %v434 = vmul.f32 %v277, %v429
    %vm435 = vcmask 15360
    %v436 = vsel %vm435, %v431, 0.0
    %v437 = vsel %vm435, %v432, 0.0
    %v438 = vadd.f32 %v436, %v437
    %v439 = vsel %vm435, %v433, 0.0
    %v440 = vadd.f32 %v438, %v439
    %v441 = vsel %vm435, %v434, 0.0
    %v442 = vadd.f32 %v440, %v441
    %v443 = vrot.slane %v442, 4
    %v444 = vadd.f32 %v442, %v443
    %v445 = vrot.slane %v444, 2
    %v446 = vadd.f32 %v444, %v445
    %v447 = vrot.slane %v446, 1
    %v448 = vadd.f32 %v446, %v447
    %s449 = sld [smem:[#allocation2 + $0x1]]
    %v450 = vstv %s449
    %v451 = vadd.f32 %v448, %v450
    %v452 = vmul.f32 %v403, %v414
    %v453 = vmul.f32 %v404, %v419
    %v454 = vmul.f32 %v405, %v424
    %v455 = vmul.f32 %v406, %v429
    %v456 = vsel %vm435, %v452, 0.0
    %v457 = vsel %vm435, %v453, 0.0
    %v458 = vadd.f32 %v456, %v457
    %v459 = vsel %vm435, %v454, 0.0
    %v460 = vadd.f32 %v458, %v459
    %v461 = vsel %vm435, %v455, 0.0
    %v462 = vadd.f32 %v460, %v461
    %v463 = vrot.slane %v462, 4
    %v464 = vadd.f32 %v462, %v463
    %v465 = vrot.slane %v464, 2
    %v466 = vadd.f32 %v464, %v465
    %v467 = vrot.slane %v466, 1
    %v468 = vadd.f32 %v466, %v467
    %v469 = vadd.f32 %v468, %v450
    %s470 = sld [smem:[#allocation2]]
    %v471 = vstv %s470
    %v472 = vmul.f32 %v471, %v469
    %v473 = vadd.f32 %v451, %v472
    %vm474 = vcmask 8192
    %475 = vst.msk [vmem:[#allocation5] sm:$0x1] %vm474, %v473
    // Predicated region
    $region42: #{tpu_custom_call.1} parent=1 // pred_check
      _
    $region43: #{tpu_custom_call.1} parent=1 // pred_check_branch
      %477 = sbr.rel (0) target = $region45
    $region44: #{tpu_custom_call.1} parent=1 // pred_region
      %s479 = ssub.s32 16, 16
      %480 = vsyncadd [#allocation3], %s479
      %s482 = sshll.u32 [#allocation5], 4
      %s483 = int_to_ptr.vmem [resolvable:$true] %s482
      %485 = dma.vmem_to_hbm [thread:$0]  %s483, 16, %s9, [#allocation3]
    $region45: #{tpu_custom_call.1} parent=1 // pred_fallthru
      _
    // Predicated region
    $region46: #{tpu_custom_call.1} parent=1 // pred_check
      _
    $region47: #{tpu_custom_call.1} parent=1 // pred_check_branch
      %487 = sbr.rel (0) target = $region49
    $region48: #{tpu_custom_call.1} parent=1 // pred_region
      %488 = dma.done [#allocation3], 16
    $region49: #{tpu_custom_call.1} parent=1 // pred_fallthru
      _
    %489 = vsyncpa [#allocation3], 1
    %490 = vsyncpa [#allocation4], 1

</llo_original>
